<compile_context>
chip_gen: v7x
topology: tpu7x:2x2x1
jax: 0.10.0
libtpu: 0.0.40
codegen_flags: <defaults>
</compile_context>

<pallas_src>
import functools

import jax
import jax.numpy as jnp
from jax.experimental import pallas as pl
from jax.experimental.pallas import tpu as pltpu

EPS = 1e-12          # F.normalize eps
NORM_TEMP = 50.0     # VLPart/Detic ZeroShotClassifier norm_temperature default


def _round_up(x, m):
    return pl.cdiv(x, m) * m


# ---------------------------------------------------------------------------
# Kernel 1: fused preprocessing + global-average-pool.
#   mean_HW((x - m) / s) == (mean_HW(x) - m) / s, so the kernel only sums the
#   raw pixels over the lane-dense flattened H*W axis (reduction grid axis,
#   innermost/"arbitrary") and applies the per-channel affine once per row at
#   finalize time.  No divide inside the loop.
# ---------------------------------------------------------------------------
def _prep_pool_kernel(img_ref, mean_ref, inv_std_ref, out_ref, *, inv_hw):
    j = pl.program_id(1)

    @pl.when(j == 0)
    def _():
        out_ref[...] = jnp.zeros_like(out_ref)

    out_ref[...] += jnp.sum(img_ref[...], axis=1, keepdims=True)

    @pl.when(j == pl.num_programs(1) - 1)
    def _():
        out_ref[...] = (out_ref[...] * inv_hw - mean_ref[...]) * inv_std_ref[...]


def fused_preprocess_pool(img, pixel_mean, pixel_std):
    """Returns [N, C] pooled, preprocessed features from an NCHW image."""
    N, C, H, W = img.shape
    NC, HW = N * C, H * W
    x = img.reshape(NC, HW).astype(jnp.float32)

    # Row (sublane) tiling: keep the full (small) row dim, else 128-row tiles.
    if NC <= 128:
        nc_pad, r_tile = NC, NC
    else:
        nc_pad, r_tile = _round_up(NC, 128), 128
    # Column (lane) tiling: big lane-dense tiles (multiples of 128).
    if HW <= 4096:
        hw_pad, c_tile = HW, HW
    else:
        c_tile = 2048
        hw_pad = _round_up(HW, c_tile)

    if (nc_pad, hw_pad) != (NC, HW):
        x = jnp.pad(x, ((0, nc_pad - NC), (0, hw_pad - HW)))  # zero pad: sum-safe

    # Per-row channel constants (row r -> channel r % C); reciprocal of std.
    mean_rows = jnp.tile(pixel_mean.astype(jnp.float32), N)[:, None]
    inv_std_rows = jnp.tile(1.0 / pixel_std.astype(jnp.float32), N)[:, None]
    if nc_pad != NC:
        mean_rows = jnp.pad(mean_rows, ((0, nc_pad - NC), (0, 0)))
        inv_std_rows = jnp.pad(inv_std_rows, ((0, nc_pad - NC), (0, 0)),
                               constant_values=1.0)

    grid = (nc_pad // r_tile, hw_pad // c_tile)
    pooled = pl.pallas_call(
        functools.partial(_prep_pool_kernel, inv_hw=1.0 / float(HW)),
        out_shape=jax.ShapeDtypeStruct((nc_pad, 1), jnp.float32),
        grid=grid,
        in_specs=[
            pl.BlockSpec((r_tile, c_tile), lambda i, j: (i, j)),
            pl.BlockSpec((r_tile, 1), lambda i, j: (i, 0)),
            pl.BlockSpec((r_tile, 1), lambda i, j: (i, 0)),
        ],
        out_specs=pl.BlockSpec((r_tile, 1), lambda i, j: (i, 0)),
        compiler_params=pltpu.CompilerParams(
            dimension_semantics=("parallel", "arbitrary")),
    )(x, mean_rows, inv_std_rows)
    return pooled[:NC, 0].reshape(N, C)


# ---------------------------------------------------------------------------
# Setup-time prep of the static classifier (set_zs_weight semantics).
# ---------------------------------------------------------------------------
def prepare_zs_classifier(zs_weight_raw):
    """Append zero background column, F.normalize(p=2, dim=0), pad embedding
    dim to a multiple of 128 and class dim to a lane-dense multiple of 128
    (512-tiles for large vocabularies), cast to bf16 for the MXU.  Done once
    per vocabulary, not per forward (weights are static at inference)."""
    D, C = zs_weight_raw.shape
    zs = jnp.concatenate(
        [zs_weight_raw, jnp.zeros((D, 1), zs_weight_raw.dtype)], axis=1)
    zs = zs / jnp.maximum(jnp.sqrt(jnp.sum(zs * zs, axis=0, keepdims=True)), EPS)

    c_out = C + 1
    c_pad = _round_up(c_out, 128) if c_out <= 512 else _round_up(c_out, 512)
    d_pad = _round_up(D, 128)
    zs = jnp.pad(zs, ((0, d_pad - D), (0, c_pad - c_out)))
    return {"zs_norm": zs.astype(jnp.bfloat16), "num_out": c_out,
            "embed_dim": D}


# ---------------------------------------------------------------------------
# Kernel 2: zero-shot classification head.
#   emb    = feat @ W_proj + b            (stand-in box-head projection)
#   emb_n  = emb / max(||emb||_2, eps)    (F.normalize, dim=1)  -> bf16 scratch
#   scores = sigmoid(norm_temp * emb_n @ zs_n)   (MXU, f32 accumulate)
#   Grid = (ROI tiles [parallel], class tiles [arbitrary]); the normalized
#   embedding is computed once per ROI tile (class tile 0) and reused from the
#   VMEM scratch across all class tiles; constant-index inputs (W, b) are only
#   DMA'd once by the pipeliner.
# ---------------------------------------------------------------------------
def _zs_head_kernel(feat_ref, w_ref, b_ref, zs_ref, out_ref, xn_ref):
    @pl.when(pl.program_id(1) == 0)
    def _():
        x = jnp.dot(feat_ref[...], w_ref[...],
                    preferred_element_type=jnp.float32) + b_ref[...]
        # F.normalize(dim=1): x / max(||x||, eps); reciprocal on the EUP slot.
        norm = jnp.maximum(jnp.sqrt(jnp.sum(x * x, axis=1, keepdims=True)), EPS)
        xn_ref[...] = (x * pl.reciprocal(norm, approx=True)).astype(xn_ref.dtype)

    logits = NORM_TEMP * jnp.dot(xn_ref[...], zs_ref[...],
                                 preferred_element_type=jnp.float32)
    out_ref[...] = jax.nn.sigmoid(logits)


def zs_head(feat, w_proj, b_proj, zs_prepared):
    """feat: [N, D_in] ROI features, w_proj: [D_in, D], b_proj: [1, D]."""
    zs_n = zs_prepared["zs_norm"]            # [d_pad, c_pad] bf16, unit columns
    c_out = zs_prepared["num_out"]
    d_pad, c_pad = zs_n.shape
    M, K = feat.shape
    D = w_proj.shape[1]
    assert D == zs_prepared["embed_dim"]

    # Sublane/lane friendly zero padding (preserves dot products & row norms;
    # padded rows/cols sliced off before thresholding, so padded class lanes
    # never produce sigmoid(0)=0.5 detections).
    if M <= 128:
        m_pad = _round_up(M, 8)
        m_tile = m_pad
    else:
        m_pad = _round_up(M, 128)
        m_tile = 128
    k_pad = _round_up(K, 8)
    c_tile = min(c_pad, 512)

    feat_p = jnp.pad(feat.astype(jnp.float32),
                     ((0, m_pad - M), (0, k_pad - K)))
    w_p = jnp.pad(w_proj.astype(jnp.float32),
                  ((0, k_pad - K), (0, d_pad - D)))
    b_p = jnp.pad(b_proj.astype(jnp.float32), ((0, 0), (0, d_pad - D)))

    grid = (m_pad // m_tile, c_pad // c_tile)
    scores = pl.pallas_call(
        _zs_head_kernel,
        out_shape=jax.ShapeDtypeStruct((m_pad, c_pad), jnp.float32),
        grid=grid,
        in_specs=[
            pl.BlockSpec((m_tile, k_pad), lambda i, j: (i, 0)),
            pl.BlockSpec((k_pad, d_pad), lambda i, j: (0, 0)),
            pl.BlockSpec((1, d_pad), lambda i, j: (0, 0)),
            pl.BlockSpec((d_pad, c_tile), lambda i, j: (0, j)),
        ],
        out_specs=pl.BlockSpec((m_tile, c_tile), lambda i, j: (i, j)),
        scratch_shapes=[pltpu.VMEM((m_tile, d_pad), jnp.bfloat16)],
        compiler_params=pltpu.CompilerParams(
            dimension_semantics=("parallel", "arbitrary")),
    )(feat_p, w_p, b_p, zs_n)
    return scores[:M, :c_out]


# ---------------------------------------------------------------------------
# Wrapper mimicking VLPart.forward(img) at the level we can implement.
# ---------------------------------------------------------------------------
def vlpart_forward(img, params, zs_prepared, confidence_threshold=0.5):
    # 1) fused preprocessing + global-average-pool ROI-feature stand-in
    roi_feat = fused_preprocess_pool(img, params["pixel_mean"],
                                     params["pixel_std"])
    # 2) TODO(synk): backbone/FPN/RPN/ROIAlign/box regression/NMS not implemented
    # 3) zero-shot classification head
    scores = zs_head(roi_feat, params["w_proj"], params["b_proj"], zs_prepared)
    keep = scores > confidence_threshold     # SCORE_THRESH_TEST filtering
    return scores, keep


# ---------------------------------------------------------------------------
# Pure-JAX reference (for a loose correctness check against the kernels).
# ---------------------------------------------------------------------------
def _reference_scores(img, params):
    x = (img - params["pixel_mean"][None, :, None, None]) \
        / params["pixel_std"][None, :, None, None]
    feat = x.mean(axis=(2, 3))
    emb = feat @ params["w_proj"] + params["b_proj"]
    emb = emb / jnp.maximum(
        jnp.sqrt(jnp.sum(emb * emb, axis=1, keepdims=True)), EPS)
    D = params["zs_weight"].shape[0]
    zs = jnp.concatenate(
        [params["zs_weight"], jnp.zeros((D, 1), jnp.float32)], axis=1)
    zs = zs / jnp.maximum(
        jnp.sqrt(jnp.sum(zs * zs, axis=0, keepdims=True)), EPS)
    return jax.nn.sigmoid(NORM_TEMP * (emb @ zs))


if __name__ == "__main__":
    # small, deterministic synthetic shapes
    N_IMG, C_IN, H, W = 2, 3, 16, 16           # image: [2, 3, 16, 16] NCHW
    D_EMB = 128                                # CLIP RN50 text embed dim (small)
    N_CLS = 48                                 # vocabulary size (+1 bg in head)

    key = jax.random.PRNGKey(0)
    k_img, k_zs, k_w, k_b = jax.random.split(key, 4)

    img = jax.random.uniform(k_img, (N_IMG, C_IN, H, W), jnp.float32) * 255.0

    params = {
        # detectron2 default BGR pixel mean / std (deterministic constants)
        "pixel_mean": jnp.array([103.530, 116.280, 123.675], jnp.float32),
        "pixel_std": jnp.array([57.375, 57.120, 58.395], jnp.float32),
        # synthetic CLIP text classifier, already permuted to [D, C]
        "zs_weight": jax.random.normal(k_zs, (D_EMB, N_CLS), jnp.float32),
        # stand-in box-head projection to embedding space
        "w_proj": jax.random.normal(k_w, (C_IN, D_EMB), jnp.float32) * 0.1,
        "b_proj": jax.random.normal(k_b, (1, D_EMB), jnp.float32) * 0.01,
    }

    # set_vocab / set_zs_weight: static per-vocabulary prep, done once.
    zs_prepared = prepare_zs_classifier(params["zs_weight"])

    scores, keep = vlpart_forward(img, params, zs_prepared,
                                  confidence_threshold=0.5)
    jax.block_until_ready(scores)
    jax.block_until_ready(keep)

    assert scores.shape == (N_IMG, N_CLS + 1)
    assert keep.shape == (N_IMG, N_CLS + 1)
    assert bool(jnp.all(jnp.isfinite(scores)))

    # Loose tolerance: classifier weights run in bf16 on the MXU and the row
    # normalization uses the approximate EUP reciprocal.
    ref = _reference_scores(img, params)
    assert bool(jnp.max(jnp.abs(scores - ref)) < 0.1)

    print("KERNEL_OK")
</pallas_src>

<mosaic_0001>
module attributes {stable_mosaic.version = 11 : i64} {
  func.func @_prep_pool_kernel(%arg0: i32, %arg1: i32, %arg2: memref<6x256xf32, #tpu.memory_space<vmem>>, %arg3: memref<6x1xf32, #tpu.memory_space<vmem>>, %arg4: memref<6x1xf32, #tpu.memory_space<vmem>>, %arg5: memref<6x1xf32, #tpu.memory_space<vmem>>) attributes {dimension_semantics = [#tpu.dimension_semantics<parallel>, #tpu.dimension_semantics<arbitrary>], iteration_bounds = array<i64: 1, 1>, scalar_prefetch = 0 : i64, scratch_operands = 0 : i64, tpu.core_type = #tpu.core_type<tc>, window_params = [{transform_indices = @transform_0, window_bounds = array<i64: 6, 256>}, {transform_indices = @transform_1, window_bounds = array<i64: 6, 1>}, {transform_indices = @transform_2, window_bounds = array<i64: 6, 1>}, {transform_indices = @transform_3, window_bounds = array<i64: 6, 1>}]} {
    %c0_i32 = arith.constant 0 : i32
    %0 = arith.cmpi eq, %arg1, %c0_i32 : i32
    %1 = arith.extui %0 : i1 to i32
    %c0_i32_0 = arith.constant 0 : i32
    %2 = arith.cmpi ne, %1, %c0_i32_0 : i32
    scf.if %2 {
      %cst_8 = arith.constant 0.000000e+00 : f32
      %12 = vector.broadcast %cst_8 : f32 to vector<6x1xf32>
      %c0_9 = arith.constant 0 : index
      %c0_10 = arith.constant 0 : index
      %13 = vector.load %arg5[%c0_9, %c0_10] : memref<6x1xf32, #tpu.memory_space<vmem>>, vector<6x1xf32>
      tpu.vector_store %arg5[%c0_9, %c0_10], %12 {strides = array<i32>} : memref<6x1xf32, #tpu.memory_space<vmem>>, vector<6x1xf32>,
    } else {
    }
    %c0 = arith.constant 0 : index
    %c0_1 = arith.constant 0 : index
    %3 = vector.load %arg5[%c0, %c0_1] : memref<6x1xf32, #tpu.memory_space<vmem>>, vector<6x1xf32>
    %c0_2 = arith.constant 0 : index
    %c0_3 = arith.constant 0 : index
    %4 = vector.load %arg2[%c0_2, %c0_3] : memref<6x256xf32, #tpu.memory_space<vmem>>, vector<6x256xf32>
    %cst = arith.constant dense<0.000000e+00> : vector<6xf32>
    %5 = vector.multi_reduction <add>, %4, %cst [1] : vector<6x256xf32> to vector<6xf32>
    %6 = vector.shape_cast %5 : vector<6xf32> to vector<6x1xf32>
    %7 = arith.addf %3, %6 : vector<6x1xf32>
    %c0_4 = arith.constant 0 : index
    %c0_5 = arith.constant 0 : index
    %8 = vector.load %arg5[%c0_4, %c0_5] : memref<6x1xf32, #tpu.memory_space<vmem>>, vector<6x1xf32>
    tpu.vector_store %arg5[%c0_4, %c0_5], %7 {strides = array<i32>} : memref<6x1xf32, #tpu.memory_space<vmem>>, vector<6x1xf32>,
    %c0_i32_6 = arith.constant 0 : i32
    %9 = arith.cmpi eq, %arg1, %c0_i32_6 : i32
    %10 = arith.extui %9 : i1 to i32
    %c0_i32_7 = arith.constant 0 : i32
    %11 = arith.cmpi ne, %10, %c0_i32_7 : i32
    scf.if %11 {
      %c0_8 = arith.constant 0 : index
      %c0_9 = arith.constant 0 : index
      %12 = vector.load %arg5[%c0_8, %c0_9] : memref<6x1xf32, #tpu.memory_space<vmem>>, vector<6x1xf32>
      %cst_10 = arith.constant 3.906250e-03 : f32
      %13 = vector.broadcast %cst_10 : f32 to vector<6x1xf32>
      %14 = arith.mulf %12, %13 : vector<6x1xf32>
      %c0_11 = arith.constant 0 : index
      %c0_12 = arith.constant 0 : index
      %15 = vector.load %arg3[%c0_11, %c0_12] : memref<6x1xf32, #tpu.memory_space<vmem>>, vector<6x1xf32>
      %16 = arith.subf %14, %15 : vector<6x1xf32>
      %c0_13 = arith.constant 0 : index
      %c0_14 = arith.constant 0 : index
      %17 = vector.load %arg4[%c0_13, %c0_14] : memref<6x1xf32, #tpu.memory_space<vmem>>, vector<6x1xf32>
      %18 = arith.mulf %16, %17 : vector<6x1xf32>
      %c0_15 = arith.constant 0 : index
      %c0_16 = arith.constant 0 : index
      %19 = vector.load %arg5[%c0_15, %c0_16] : memref<6x1xf32, #tpu.memory_space<vmem>>, vector<6x1xf32>
      tpu.vector_store %arg5[%c0_15, %c0_16], %18 {strides = array<i32>} : memref<6x1xf32, #tpu.memory_space<vmem>>, vector<6x1xf32>,
    } else {
    }
    return
  }
  func.func @transform_0(%arg0: i32, %arg1: i32) -> (i32, i32) {
    %c0_i32 = arith.constant 0 : i32
    return %arg0, %arg1 : i32, i32
  }
  func.func @transform_1(%arg0: i32, %arg1: i32) -> (i32, i32) {
    %c0_i32 = arith.constant 0 : i32
    %c0_i32_0 = arith.constant 0 : i32
    return %arg0, %c0_i32 : i32, i32
  }
  func.func @transform_2(%arg0: i32, %arg1: i32) -> (i32, i32) {
    %c0_i32 = arith.constant 0 : i32
    %c0_i32_0 = arith.constant 0 : i32
    return %arg0, %c0_i32 : i32, i32
  }
  func.func @transform_3(%arg0: i32, %arg1: i32) -> (i32, i32) {
    %c0_i32 = arith.constant 0 : i32
    %c0_i32_0 = arith.constant 0 : i32
    return %arg0, %c0_i32 : i32, i32
  }
}

</mosaic_0001>

<llo_original>
// kernel: tpu_custom_call.1
$region0: #{tpu_custom_call.1}
  #allocation0 [shape = 'u32[]', space=smem, size = 0x4, offset = 0x4, fixed_abs, tag = 'smem constant byte address 0x4 - core index']
  #allocation1 [shape = 'u32[144,128]{1,0:T(1,128)}', space=vmem, size = 0x12000, scoped, tag = 'internal scratch']
  %s0 = inlined_call_operand.vmem [shape: f32[6,256], index: 0, kind: input, shape index: {}]
  %s1 = inlined_call_operand.vmem [shape: f32[6,1], index: 1, kind: input, shape index: {}]
  %s2 = inlined_call_operand.vmem [shape: f32[6,1], index: 2, kind: input, shape index: {}]
  %s3 = inlined_call_operand.vmem [shape: f32[6,1], index: 3, kind: output, shape index: {}]
  %s4 = sld [smem:[#allocation0]]
  $region30: #{tpu_custom_call.1} parent=0
    _
  %s6 = ssub.s32 1, %s4
  %s7 = scalar_select 0, %s6, %s4
  // Predicated region
  $region2: #{tpu_custom_call.1} parent=0 // pred_check
    _
  $region3: #{tpu_custom_call.1} parent=0 // pred_check_branch
    %9 = sbr.rel (0) target = $region5
  $region4: #{tpu_custom_call.1} parent=0 // pred_region
    _
  $region5: #{tpu_custom_call.1} parent=0 // pred_fallthru
    _
  // Predicated region
  $region6: #{tpu_custom_call.1} parent=0 // pred_check
    _
  $region7: #{tpu_custom_call.1} parent=0 // pred_check_branch
    %11 = sbr.rel (0) target = $region9
  $region8: #{tpu_custom_call.1} parent=0 // pred_region
    _
  $region9: #{tpu_custom_call.1} parent=0 // pred_fallthru
    _
  // Predicated region
  $region10: #{tpu_custom_call.1} parent=0 // pred_check
    _
  $region11: #{tpu_custom_call.1} parent=0 // pred_check_branch
    %13 = sbr.rel (0) target = $region13
  $region12: #{tpu_custom_call.1} parent=0 // pred_region
    _
  $region13: #{tpu_custom_call.1} parent=0 // pred_fallthru
    _
  %p14 = scmp.eq.s32.totalorder 0, 0
  // Predicated region
  $region14: #{tpu_custom_call.1} parent=0 // pred_check
    %p15 = pneg %p14
  $region15: #{tpu_custom_call.1} parent=0 // pred_check_branch
    %17 = sbr.rel (%p15) target = $region17
  $region16: #{tpu_custom_call.1} parent=0 // pred_region
    %vm18 = vcmask 5120
    %19 = vst.msk [vmem:[%s3] sm:$0x3f] %vm18, 0.0
  $region17: #{tpu_custom_call.1} parent=0 // pred_fallthru
    _
  %v20 = vld [vmem:[%s3] sm:$0x3f]
  %v21 = vld [vmem:[%s0] sm:$0x3f]
  %v22 = vld [vmem:[%s0 + $0x8] sm:$0x3f]
  %vm23 = vcmask 1045504
  %v24 = vsel %vm23, %v21, 0.0
  %v25 = vsel %vm23, %v22, 0.0
  %v26 = vadd.f32 %v24, %v25
  %27 = vadd.xlane.f32.xlu0 %v26
  %v28 = vpop.xlane.xlu0 %27
  %v29 = vadd.f32 %v20, %v28
  %vm30 = vcmask 5120
  %31 = vst.msk [vmem:[%s3] sm:$0x3f] %vm30, %v29
  // Predicated region
  $region18: #{tpu_custom_call.1} parent=0 // pred_check
    %p32 = pneg %p14
  $region19: #{tpu_custom_call.1} parent=0 // pred_check_branch
    %34 = sbr.rel (%p32) target = $region21
  $region20: #{tpu_custom_call.1} parent=0 // pred_region
    %v35 = vld [vmem:[%s3] sm:$0x3f]
    %v36 = vmul.f32 %v35, 0.00390625
    %v37 = vld [vmem:[%s1] sm:$0x3f]
    %v38 = vsub.f32 %v36, %v37
    %v39 = vld [vmem:[%s2] sm:$0x3f]
    %v40 = vmul.f32 %v38, %v39
    %41 = vst.msk [vmem:[%s3] sm:$0x3f] %vm30, %v40
  $region21: #{tpu_custom_call.1} parent=0 // pred_fallthru
    _
  // Predicated region
  $region22: #{tpu_custom_call.1} parent=0 // pred_check
    _
  $region23: #{tpu_custom_call.1} parent=0 // pred_check_branch
    %43 = sbr.rel (0) target = $region25
  $region24: #{tpu_custom_call.1} parent=0 // pred_region
    _
  $region25: #{tpu_custom_call.1} parent=0 // pred_fallthru
    _
  // Predicated region
  $region26: #{tpu_custom_call.1} parent=0 // pred_check
    _
  $region27: #{tpu_custom_call.1} parent=0 // pred_check_branch
    %45 = sbr.rel (0) target = $region29
  $region28: #{tpu_custom_call.1} parent=0 // pred_region
    _
  $region29: #{tpu_custom_call.1} parent=0 // pred_fallthru
    _

</llo_original>
